<compile_context>
chip_gen: v6e
topology: v6e:2x2x1
jax: 0.10.0
libtpu: 0.0.40
codegen_flags: <defaults>
</compile_context>

<pallas_src>
import numpy as np
import jax
import jax.numpy as jnp
from jax.experimental import pallas as pl
from jax.experimental.pallas import tpu as pltpu

PI = float(np.pi)
LOG2 = float(np.log(2.0))


def _ssp(x):
    # ShiftedSoftplus: softplus(x) - log(2), numerically stable via logaddexp.
    return jnp.logaddexp(x, 0.0) - LOG2


def _round_up(x, m):
    return ((x + m - 1) // m) * m


def _make_kernel(n_nodes):
    def kernel(ea_ref, c_ref, ej_ref, ei_ref, x_ref,
               wm1_ref, bm1_ref, wm2_ref, bm2_ref,
               wl1_ref, wl2_ref, bl2_ref,
               out_ref, acc_ref):
        step = pl.program_id(0)

        @pl.when(step == 0)
        def _init():
            acc_ref[...] = jnp.zeros_like(acc_ref)

        ea = ea_ref[...]                     # [Et, G]  edge_attr tile
        C = c_ref[...]                       # [Et, 1]  precomputed cutoff factor
        x = x_ref[...]                       # [N, H]   resident node features
        et = ea.shape[0]

        # filter MLP on edge_attr: Linear -> ssp -> Linear, then * C
        h1 = _ssp(jnp.dot(ea, wm1_ref[...],
                          preferred_element_type=jnp.float32) + bm1_ref[...])
        W = jnp.dot(h1, wm2_ref[...],
                    preferred_element_type=jnp.float32) + bm2_ref[...]
        W = W * C                            # [Et, F]  (padded edges have C=0)

        # per-tile one-hots built in registers from int32 indices (no HBM cost)
        node_iota = jax.lax.broadcasted_iota(jnp.int32, (et, n_nodes), 1)

        # gather x[j]: [Et, N] @ [N, H]
        j_ids = ej_ref[...]                  # [Et, 1] int32
        onehot_j = (node_iota == j_ids).astype(jnp.float32)
        xj = jnp.dot(onehot_j, x, preferred_element_type=jnp.float32)  # [Et, H]

        # messages = W * lin1(x[j])
        msg = W * jnp.dot(xj, wl1_ref[...],
                          preferred_element_type=jnp.float32)          # [Et, F]

        # scatter-add over destination index i:
        #   acc[n, f] += sum_e onehot_i[e, n] * msg[e, f]
        i_ids = ei_ref[...]                  # [Et, 1] int32
        onehot_i = (node_iota == i_ids).astype(jnp.float32)             # [Et, N]
        acc_ref[...] += jax.lax.dot_general(
            onehot_i, msg,
            dimension_numbers=(((0,), (0,)), ((), ())),
            preferred_element_type=jnp.float32)                         # [N, F]

        @pl.when(step == pl.num_programs(0) - 1)
        def _finalize():
            h = _ssp(jnp.dot(acc_ref[...], wl2_ref[...],
                             preferred_element_type=jnp.float32) + bl2_ref[...])
            out_ref[...] = x + h

    return kernel


def interaction_block(x, edge_i, edge_j, edge_weight, edge_attr, params, cutoff,
                      *, edge_tile=1024):
    N, H = x.shape
    E, G = edge_attr.shape
    F = params["wl1"].shape[1]

    # ---- cheap O(E) preprocessing in the wrapper (keeps kernel lane-dense) ----
    d = jnp.sqrt(jnp.sum(edge_weight * edge_weight, axis=1, keepdims=True))  # [E,1]
    C = 0.5 * (jnp.cos(d * (PI / cutoff)) + 1.0)
    C = C * (d <= cutoff).astype(jnp.float32)

    # edge tile: multiple of 8 sublanes; pad E so padded edges contribute zero
    e_tile = max(8, min(int(edge_tile), _round_up(E, 8)))
    e_tile = _round_up(e_tile, 8)
    E_pad = _round_up(E, e_tile)
    pad = E_pad - E

    ea = jnp.pad(edge_attr.astype(jnp.float32), ((0, pad), (0, 0)))
    C = jnp.pad(C, ((0, pad), (0, 0)))                 # padded edges: C = 0
    ei = jnp.pad(edge_i.astype(jnp.int32), (0, pad)).reshape(E_pad, 1)
    ej = jnp.pad(edge_j.astype(jnp.int32), (0, pad)).reshape(E_pad, 1)

    grid = (E_pad // e_tile,)

    def edge_spec(width):
        return pl.BlockSpec((e_tile, width), lambda e: (e, 0))

    def const_spec(shape):
        return pl.BlockSpec(shape, lambda e: (0, 0))

    in_specs = [
        edge_spec(G),                    # edge_attr tile
        edge_spec(1),                    # cutoff factor C tile
        edge_spec(1),                    # edge_j tile (gather indices)
        edge_spec(1),                    # edge_i tile (scatter indices)
        const_spec((N, H)),              # x, resident across the edge grid
        const_spec(params["wm1"].shape),
        const_spec(params["bm1"].shape),
        const_spec(params["wm2"].shape),
        const_spec(params["bm2"].shape),
        const_spec(params["wl1"].shape),
        const_spec(params["wl2"].shape),
        const_spec(params["bl2"].shape),
    ]

    args = (ea, C, ej, ei, x,
            params["wm1"], params["bm1"], params["wm2"], params["bm2"],
            params["wl1"], params["wl2"], params["bl2"])

    in_bytes = sum(int(a.size) * a.dtype.itemsize for a in args)
    cost = pl.CostEstimate(
        flops=int(2 * E_pad * (G * F + F * F + N * H + H * F + N * F)
                  + 2 * N * F * H),
        transcendentals=int(2 * E_pad * F + 2 * N * H),
        bytes_accessed=int(in_bytes + x.size * x.dtype.itemsize),
    )

    return pl.pallas_call(
        _make_kernel(N),
        out_shape=jax.ShapeDtypeStruct((N, H), jnp.float32),
        grid_spec=pltpu.PrefetchScalarGridSpec(
            num_scalar_prefetch=0,
            grid=grid,
            in_specs=in_specs,
            out_specs=pl.BlockSpec((N, H), lambda e: (0, 0)),
            scratch_shapes=[pltpu.VMEM((N, F), jnp.float32)],
        ),
        compiler_params=pltpu.CompilerParams(
            dimension_semantics=("arbitrary",),
            vmem_limit_bytes=32 * 1024 * 1024),
        cost_estimate=cost,
    )(*args)


def _reference(x, edge_i, edge_j, edge_weight, edge_attr, params, cutoff):
    d = jnp.linalg.norm(edge_weight, axis=1)
    C = 0.5 * (jnp.cos(d * PI / cutoff) + 1.0) * (d <= cutoff).astype(x.dtype)
    h1 = _ssp(edge_attr @ params["wm1"] + params["bm1"])
    W = (h1 @ params["wm2"] + params["bm2"]) * C[:, None]
    msg = W * (x[edge_j] @ params["wl1"])
    agg = jnp.zeros((x.shape[0], W.shape[1]), jnp.float32).at[edge_i].add(msg)
    h = _ssp(agg @ params["wl2"] + params["bl2"])
    return x + h


if __name__ == "__main__":
    # Small synthetic shapes consistent with the module.
    N = 8            # number of nodes
    E = 16           # number of edges
    hidden_dim = 32
    num_gaussians = 16
    num_filters = 32
    cutoff = 2.0

    key = jax.random.PRNGKey(0)
    ks = jax.random.split(key, 12)

    x = jax.random.normal(ks[0], (N, hidden_dim), jnp.float32)
    edge_weight = jax.random.normal(ks[1], (E, 3), jnp.float32)
    edge_attr = jax.random.normal(ks[2], (E, num_gaussians), jnp.float32)
    edge_i = jax.random.randint(ks[3], (E,), 0, N)
    edge_j = jax.random.randint(ks[4], (E,), 0, N)

    def init_lin(k, fan_in, fan_out):
        bound = 1.0 / np.sqrt(fan_in)
        return jax.random.uniform(k, (fan_in, fan_out), jnp.float32,
                                  -bound, bound)

    params = {
        # mlp: Linear(num_gaussians, num_filters) -> ssp -> Linear(F, F)
        "wm1": init_lin(ks[5], num_gaussians, num_filters),
        "bm1": jax.random.uniform(ks[6], (1, num_filters), jnp.float32,
                                  -1.0 / np.sqrt(num_gaussians),
                                  1.0 / np.sqrt(num_gaussians)),
        "wm2": init_lin(ks[7], num_filters, num_filters),
        "bm2": jax.random.uniform(ks[8], (1, num_filters), jnp.float32,
                                  -1.0 / np.sqrt(num_filters),
                                  1.0 / np.sqrt(num_filters)),
        # lin1: Linear(hidden_dim, num_filters, bias=False)
        "wl1": init_lin(ks[9], hidden_dim, num_filters),
        # lin2: Linear(num_filters, hidden_dim)
        "wl2": init_lin(ks[10], num_filters, hidden_dim),
        "bl2": jax.random.uniform(ks[11], (1, hidden_dim), jnp.float32,
                                  -1.0 / np.sqrt(num_filters),
                                  1.0 / np.sqrt(num_filters)),
    }

    # edge_tile=8 -> 2 grid steps, exercising the accumulator init / finalize.
    out = interaction_block(x, edge_i, edge_j, edge_weight, edge_attr,
                            params, cutoff, edge_tile=8)
    out = jax.block_until_ready(out)

    ref = _reference(x, edge_i, edge_j, edge_weight, edge_attr, params, cutoff)
    np.testing.assert_allclose(np.asarray(out), np.asarray(ref),
                               rtol=1e-5, atol=1e-5)
    print("KERNEL_OK")
</pallas_src>

<mosaic_0001>
module attributes {stable_mosaic.version = 11 : i64} {
  func.func @kernel(%arg0: i32, %arg1: memref<8x16xf32, #tpu.memory_space<vmem>>, %arg2: memref<8x1xf32, #tpu.memory_space<vmem>>, %arg3: memref<8x1xi32, #tpu.memory_space<vmem>>, %arg4: memref<8x1xi32, #tpu.memory_space<vmem>>, %arg5: memref<8x32xf32, #tpu.memory_space<vmem>>, %arg6: memref<16x32xf32, #tpu.memory_space<vmem>>, %arg7: memref<1x32xf32, #tpu.memory_space<vmem>>, %arg8: memref<32x32xf32, #tpu.memory_space<vmem>>, %arg9: memref<1x32xf32, #tpu.memory_space<vmem>>, %arg10: memref<32x32xf32, #tpu.memory_space<vmem>>, %arg11: memref<32x32xf32, #tpu.memory_space<vmem>>, %arg12: memref<1x32xf32, #tpu.memory_space<vmem>>, %arg13: memref<8x32xf32, #tpu.memory_space<vmem>>, %arg14: memref<8x32xf32, #tpu.memory_space<vmem>>) attributes {dimension_semantics = [#tpu.dimension_semantics<arbitrary>], iteration_bounds = array<i64: 2>, scalar_prefetch = 0 : i64, scratch_operands = 1 : i64, tpu.core_type = #tpu.core_type<tc>, window_params = [{transform_indices = @transform_0, window_bounds = array<i64: 8, 16>}, {transform_indices = @transform_1, window_bounds = array<i64: 8, 1>}, {transform_indices = @transform_2, window_bounds = array<i64: 8, 1>}, {transform_indices = @transform_3, window_bounds = array<i64: 8, 1>}, {pipeline_mode = #tpu.pipeline_mode<synchronous>, transform_indices = @transform_4, window_bounds = array<i64: 8, 32>}, {pipeline_mode = #tpu.pipeline_mode<synchronous>, transform_indices = @transform_5, window_bounds = array<i64: 16, 32>}, {pipeline_mode = #tpu.pipeline_mode<synchronous>, transform_indices = @transform_6, window_bounds = array<i64: 1, 32>}, {pipeline_mode = #tpu.pipeline_mode<synchronous>, transform_indices = @transform_7, window_bounds = array<i64: 32, 32>}, {pipeline_mode = #tpu.pipeline_mode<synchronous>, transform_indices = @transform_8, window_bounds = array<i64: 1, 32>}, {pipeline_mode = #tpu.pipeline_mode<synchronous>, transform_indices = @transform_9, window_bounds = array<i64: 32, 32>}, {pipeline_mode = #tpu.pipeline_mode<synchronous>, transform_indices = @transform_10, window_bounds = array<i64: 32, 32>}, {pipeline_mode = #tpu.pipeline_mode<synchronous>, transform_indices = @transform_11, window_bounds = array<i64: 1, 32>}, {pipeline_mode = #tpu.pipeline_mode<synchronous>, transform_indices = @transform_12, window_bounds = array<i64: 8, 32>}]} {
    %c0_i32 = arith.constant 0 : i32
    %0 = arith.cmpi eq, %arg0, %c0_i32 : i32
    %1 = arith.extui %0 : i1 to i32
    %c0_i32_0 = arith.constant 0 : i32
    %2 = arith.cmpi ne, %1, %c0_i32_0 : i32
    scf.if %2 {
      %cst_32 = arith.constant 0.000000e+00 : f32
      %56 = vector.broadcast %cst_32 : f32 to vector<8x32xf32>
      %c0_33 = arith.constant 0 : index
      %c0_34 = arith.constant 0 : index
      %57 = vector.load %arg14[%c0_33, %c0_34] : memref<8x32xf32, #tpu.memory_space<vmem>>, vector<8x32xf32>
      tpu.vector_store %arg14[%c0_33, %c0_34], %56 {strides = array<i32>} : memref<8x32xf32, #tpu.memory_space<vmem>>, vector<8x32xf32>,
    } else {
    }
    %c0 = arith.constant 0 : index
    %c0_1 = arith.constant 0 : index
    %3 = vector.load %arg1[%c0, %c0_1] : memref<8x16xf32, #tpu.memory_space<vmem>>, vector<8x16xf32>
    %c0_2 = arith.constant 0 : index
    %c0_3 = arith.constant 0 : index
    %4 = vector.load %arg2[%c0_2, %c0_3] : memref<8x1xf32, #tpu.memory_space<vmem>>, vector<8x1xf32>
    %c0_4 = arith.constant 0 : index
    %c0_5 = arith.constant 0 : index
    %5 = vector.load %arg5[%c0_4, %c0_5] : memref<8x32xf32, #tpu.memory_space<vmem>>, vector<8x32xf32>
    %c0_6 = arith.constant 0 : index
    %c0_7 = arith.constant 0 : index
    %6 = vector.load %arg6[%c0_6, %c0_7] : memref<16x32xf32, #tpu.memory_space<vmem>>, vector<16x32xf32>
    %cst = arith.constant dense<0.000000e+00> : vector<8x32xf32>
    %7 = tpu.matmul %3, %6, %cst {dimension_numbers = #tpu.dot_dimension_numbers<[1], [0], [0], [1], [0, 0, 1, 1], [], []>} : vector<8x16xf32>, vector<16x32xf32>, vector<8x32xf32> -> vector<8x32xf32>
    %c0_8 = arith.constant 0 : index
    %c0_9 = arith.constant 0 : index
    %8 = vector.load %arg7[%c0_8, %c0_9] : memref<1x32xf32, #tpu.memory_space<vmem>>, vector<1x32xf32>
    %9 = vector.broadcast %8 : vector<1x32xf32> to vector<8x32xf32>
    %10 = arith.addf %7, %9 : vector<8x32xf32>
    %cst_10 = arith.constant 0.000000e+00 : f32
    %11 = vector.broadcast %cst_10 : f32 to vector<8x32xf32>
    %12 = arith.maximumf %10, %11 : vector<8x32xf32>
    %13 = vector.broadcast %cst_10 : f32 to vector<8x32xf32>
    %14 = arith.subf %10, %13 : vector<8x32xf32>
    %15 = arith.cmpf one, %14, %14 : vector<8x32xf32>
    %16 = vector.broadcast %cst_10 : f32 to vector<8x32xf32>
    %17 = arith.addf %10, %16 : vector<8x32xf32>
    %18 = math.absf %14 : vector<8x32xf32>
    %cst_11 = arith.constant 0.000000e+00 : f32
    %19 = vector.broadcast %cst_11 : f32 to vector<8x32xf32>
    %20 = arith.subf %19, %18 : vector<8x32xf32>
    %21 = math.exp %20 : vector<8x32xf32>
    %22 = math.log1p %21 : vector<8x32xf32>
    %23 = arith.addf %12, %22 : vector<8x32xf32>
    %24 = arith.select %15, %17, %23 : vector<8x32xi1>, vector<8x32xf32>
    %cst_12 = arith.constant 0.693147182 : f32
    %25 = vector.broadcast %cst_12 : f32 to vector<8x32xf32>
    %26 = arith.subf %24, %25 : vector<8x32xf32>
    %c0_13 = arith.constant 0 : index
    %c0_14 = arith.constant 0 : index
    %27 = vector.load %arg8[%c0_13, %c0_14] : memref<32x32xf32, #tpu.memory_space<vmem>>, vector<32x32xf32>
    %cst_15 = arith.constant dense<0.000000e+00> : vector<8x32xf32>
    %28 = tpu.matmul %26, %27, %cst_15 {dimension_numbers = #tpu.dot_dimension_numbers<[1], [0], [0], [1], [0, 0, 1, 1], [], []>} : vector<8x32xf32>, vector<32x32xf32>, vector<8x32xf32> -> vector<8x32xf32>
    %c0_16 = arith.constant 0 : index
    %c0_17 = arith.constant 0 : index
    %29 = vector.load %arg9[%c0_16, %c0_17] : memref<1x32xf32, #tpu.memory_space<vmem>>, vector<1x32xf32>
    %30 = vector.broadcast %29 : vector<1x32xf32> to vector<8x32xf32>
    %31 = arith.addf %28, %30 : vector<8x32xf32>
    %32 = vector.broadcast %4 : vector<8x1xf32> to vector<8x32xf32>
    %33 = arith.mulf %31, %32 : vector<8x32xf32>
    %34 = tpu.iota {dimensions = array<i32: 1>} : vector<8x8xi32>
    %c0_18 = arith.constant 0 : index
    %c0_19 = arith.constant 0 : index
    %35 = vector.load %arg3[%c0_18, %c0_19] : memref<8x1xi32, #tpu.memory_space<vmem>>, vector<8x1xi32>
    %36 = vector.broadcast %35 : vector<8x1xi32> to vector<8x8xi32>
    %37 = arith.cmpi eq, %34, %36 : vector<8x8xi32>
    %38 = arith.extui %37 : vector<8x8xi1> to vector<8x8xi32>
    %39 = arith.sitofp %38 : vector<8x8xi32> to vector<8x8xf32>
    %cst_20 = arith.constant dense<0.000000e+00> : vector<8x32xf32>
    %40 = tpu.matmul %39, %5, %cst_20 {dimension_numbers = #tpu.dot_dimension_numbers<[1], [0], [0], [1], [0, 0, 1, 1], [], []>} : vector<8x8xf32>, vector<8x32xf32>, vector<8x32xf32> -> vector<8x32xf32>
    %c0_21 = arith.constant 0 : index
    %c0_22 = arith.constant 0 : index
    %41 = vector.load %arg10[%c0_21, %c0_22] : memref<32x32xf32, #tpu.memory_space<vmem>>, vector<32x32xf32>
    %cst_23 = arith.constant dense<0.000000e+00> : vector<8x32xf32>
    %42 = tpu.matmul %40, %41, %cst_23 {dimension_numbers = #tpu.dot_dimension_numbers<[1], [0], [0], [1], [0, 0, 1, 1], [], []>} : vector<8x32xf32>, vector<32x32xf32>, vector<8x32xf32> -> vector<8x32xf32>
    %43 = arith.mulf %33, %42 : vector<8x32xf32>
    %c0_24 = arith.constant 0 : index
    %c0_25 = arith.constant 0 : index
    %44 = vector.load %arg4[%c0_24, %c0_25] : memref<8x1xi32, #tpu.memory_space<vmem>>, vector<8x1xi32>
    %45 = vector.broadcast %44 : vector<8x1xi32> to vector<8x8xi32>
    %46 = arith.cmpi eq, %34, %45 : vector<8x8xi32>
    %47 = arith.extui %46 : vector<8x8xi1> to vector<8x8xi32>
    %48 = arith.sitofp %47 : vector<8x8xi32> to vector<8x8xf32>
    %c0_26 = arith.constant 0 : index
    %c0_27 = arith.constant 0 : index
    %49 = vector.load %arg14[%c0_26, %c0_27] : memref<8x32xf32, #tpu.memory_space<vmem>>, vector<8x32xf32>
    %cst_28 = arith.constant dense<0.000000e+00> : vector<8x32xf32>
    %50 = tpu.matmul %48, %43, %cst_28 {dimension_numbers = #tpu.dot_dimension_numbers<[0], [0], [1], [1], [0, 1, 1, 1], [], []>} : vector<8x8xf32>, vector<8x32xf32>, vector<8x32xf32> -> vector<8x32xf32>
    %51 = arith.addf %49, %50 : vector<8x32xf32>
    %c0_29 = arith.constant 0 : index
    %c0_30 = arith.constant 0 : index
    %52 = vector.load %arg14[%c0_29, %c0_30] : memref<8x32xf32, #tpu.memory_space<vmem>>, vector<8x32xf32>
    tpu.vector_store %arg14[%c0_29, %c0_30], %51 {strides = array<i32>} : memref<8x32xf32, #tpu.memory_space<vmem>>, vector<8x32xf32>,
    %c1_i32 = arith.constant 1 : i32
    %53 = arith.cmpi eq, %arg0, %c1_i32 : i32
    %54 = arith.extui %53 : i1 to i32
    %c0_i32_31 = arith.constant 0 : i32
    %55 = arith.cmpi ne, %54, %c0_i32_31 : i32
    scf.if %55 {
      %c0_32 = arith.constant 0 : index
      %c0_33 = arith.constant 0 : index
      %56 = vector.load %arg14[%c0_32, %c0_33] : memref<8x32xf32, #tpu.memory_space<vmem>>, vector<8x32xf32>
      %c0_34 = arith.constant 0 : index
      %c0_35 = arith.constant 0 : index
      %57 = vector.load %arg11[%c0_34, %c0_35] : memref<32x32xf32, #tpu.memory_space<vmem>>, vector<32x32xf32>
      %cst_36 = arith.constant dense<0.000000e+00> : vector<8x32xf32>
      %58 = tpu.matmul %56, %57, %cst_36 {dimension_numbers = #tpu.dot_dimension_numbers<[1], [0], [0], [1], [0, 0, 1, 1], [], []>} : vector<8x32xf32>, vector<32x32xf32>, vector<8x32xf32> -> vector<8x32xf32>
      %c0_37 = arith.constant 0 : index
      %c0_38 = arith.constant 0 : index
      %59 = vector.load %arg12[%c0_37, %c0_38] : memref<1x32xf32, #tpu.memory_space<vmem>>, vector<1x32xf32>
      %60 = vector.broadcast %59 : vector<1x32xf32> to vector<8x32xf32>
      %61 = arith.addf %58, %60 : vector<8x32xf32>
      %cst_39 = arith.constant 0.000000e+00 : f32
      %62 = vector.broadcast %cst_39 : f32 to vector<8x32xf32>
      %63 = arith.maximumf %61, %62 : vector<8x32xf32>
      %64 = vector.broadcast %cst_39 : f32 to vector<8x32xf32>
      %65 = arith.subf %61, %64 : vector<8x32xf32>
      %66 = arith.cmpf one, %65, %65 : vector<8x32xf32>
      %67 = vector.broadcast %cst_39 : f32 to vector<8x32xf32>
      %68 = arith.addf %61, %67 : vector<8x32xf32>
      %69 = math.absf %65 : vector<8x32xf32>
      %cst_40 = arith.constant 0.000000e+00 : f32
      %70 = vector.broadcast %cst_40 : f32 to vector<8x32xf32>
      %71 = arith.subf %70, %69 : vector<8x32xf32>
      %72 = math.exp %71 : vector<8x32xf32>
      %73 = math.log1p %72 : vector<8x32xf32>
      %74 = arith.addf %63, %73 : vector<8x32xf32>
      %75 = arith.select %66, %68, %74 : vector<8x32xi1>, vector<8x32xf32>
      %cst_41 = arith.constant 0.693147182 : f32
      %76 = vector.broadcast %cst_41 : f32 to vector<8x32xf32>
      %77 = arith.subf %75, %76 : vector<8x32xf32>
      %78 = arith.addf %5, %77 : vector<8x32xf32>
      %c0_42 = arith.constant 0 : index
      %c0_43 = arith.constant 0 : index
      %79 = vector.load %arg13[%c0_42, %c0_43] : memref<8x32xf32, #tpu.memory_space<vmem>>, vector<8x32xf32>
      tpu.vector_store %arg13[%c0_42, %c0_43], %78 {strides = array<i32>} : memref<8x32xf32, #tpu.memory_space<vmem>>, vector<8x32xf32>,
    } else {
    }
    return
  }
  func.func @transform_0(%arg0: i32) -> (i32, i32) {
    %c0_i32 = arith.constant 0 : i32
    %c0_i32_0 = arith.constant 0 : i32
    return %arg0, %c0_i32 : i32, i32
  }
  func.func @transform_1(%arg0: i32) -> (i32, i32) {
    %c0_i32 = arith.constant 0 : i32
    %c0_i32_0 = arith.constant 0 : i32
    return %arg0, %c0_i32 : i32, i32
  }
  func.func @transform_2(%arg0: i32) -> (i32, i32) {
    %c0_i32 = arith.constant 0 : i32
    %c0_i32_0 = arith.constant 0 : i32
    return %arg0, %c0_i32 : i32, i32
  }
  func.func @transform_3(%arg0: i32) -> (i32, i32) {
    %c0_i32 = arith.constant 0 : i32
    %c0_i32_0 = arith.constant 0 : i32
    return %arg0, %c0_i32 : i32, i32
  }
  func.func @transform_4(%arg0: i32) -> (i32, i32) {
    %c0_i32 = arith.constant 0 : i32
    %c0_i32_0 = arith.constant 0 : i32
    %c0_i32_1 = arith.constant 0 : i32
    return %c0_i32, %c0_i32_0 : i32, i32
  }
  func.func @transform_5(%arg0: i32) -> (i32, i32) {
    %c0_i32 = arith.constant 0 : i32
    %c0_i32_0 = arith.constant 0 : i32
    %c0_i32_1 = arith.constant 0 : i32
    return %c0_i32, %c0_i32_0 : i32, i32
  }
  func.func @transform_6(%arg0: i32) -> (i32, i32) {
    %c0_i32 = arith.constant 0 : i32
    %c0_i32_0 = arith.constant 0 : i32
    %c0_i32_1 = arith.constant 0 : i32
    return %c0_i32, %c0_i32_0 : i32, i32
  }
  func.func @transform_7(%arg0: i32) -> (i32, i32) {
    %c0_i32 = arith.constant 0 : i32
    %c0_i32_0 = arith.constant 0 : i32
    %c0_i32_1 = arith.constant 0 : i32
    return %c0_i32, %c0_i32_0 : i32, i32
  }
  func.func @transform_8(%arg0: i32) -> (i32, i32) {
    %c0_i32 = arith.constant 0 : i32
    %c0_i32_0 = arith.constant 0 : i32
    %c0_i32_1 = arith.constant 0 : i32
    return %c0_i32, %c0_i32_0 : i32, i32
  }
  func.func @transform_9(%arg0: i32) -> (i32, i32) {
    %c0_i32 = arith.constant 0 : i32
    %c0_i32_0 = arith.constant 0 : i32
    %c0_i32_1 = arith.constant 0 : i32
    return %c0_i32, %c0_i32_0 : i32, i32
  }
  func.func @transform_10(%arg0: i32) -> (i32, i32) {
    %c0_i32 = arith.constant 0 : i32
    %c0_i32_0 = arith.constant 0 : i32
    %c0_i32_1 = arith.constant 0 : i32
    return %c0_i32, %c0_i32_0 : i32, i32
  }
  func.func @transform_11(%arg0: i32) -> (i32, i32) {
    %c0_i32 = arith.constant 0 : i32
    %c0_i32_0 = arith.constant 0 : i32
    %c0_i32_1 = arith.constant 0 : i32
    return %c0_i32, %c0_i32_0 : i32, i32
  }
  func.func @transform_12(%arg0: i32) -> (i32, i32) {
    %c0_i32 = arith.constant 0 : i32
    %c0_i32_0 = arith.constant 0 : i32
    %c0_i32_1 = arith.constant 0 : i32
    return %c0_i32, %c0_i32_0 : i32, i32
  }
}

</mosaic_0001>

<llo_original>
// kernel: tpu_custom_call.1
$region0: #{tpu_custom_call.1}
  #allocation0 [shape = 'u32[]', space=smem, size = 0x4, offset = 0x4, fixed_abs, tag = 'smem constant byte address 0x4 - core index']
  #allocation1 [shape = 'u32[144,128]{1,0:T(1,128)}', space=vmem, size = 0x12000, scoped, tag = 'internal scratch']
  #allocation2 [shape = 'f32[8,32]{1,0:T(8,128)}', space=vmem, size = 0x1000, scoped, tag = 'scratch operand']
  %s0 = inlined_call_operand.hbm [shape: f32[16,16], index: 0, kind: input, shape index: {}]
  %s1 = inlined_call_operand.vmem [shape: f32[16,1], index: 1, kind: input, shape index: {}]
  %s2 = inlined_call_operand.vmem [shape: s32[16,1], index: 2, kind: input, shape index: {}]
  %s3 = inlined_call_operand.vmem [shape: s32[16,1], index: 3, kind: input, shape index: {}]
  %s4 = inlined_call_operand.hbm [shape: f32[8,32], index: 4, kind: input, shape index: {}]
  %s5 = inlined_call_operand.hbm [shape: f32[16,32], index: 5, kind: input, shape index: {}]
  %s6 = inlined_call_operand.vmem [shape: f32[1,32], index: 6, kind: input, shape index: {}]
  %s7 = inlined_call_operand.vmem [shape: f32[32,32], index: 7, kind: input, shape index: {}]
  %s8 = inlined_call_operand.hbm [shape: f32[1,32], index: 8, kind: input, shape index: {}]
  %s9 = inlined_call_operand.vmem [shape: f32[32,32], index: 9, kind: input, shape index: {}]
  %s10 = inlined_call_operand.hbm [shape: f32[32,32], index: 10, kind: input, shape index: {}]
  %s11 = inlined_call_operand.vmem [shape: f32[1,32], index: 11, kind: input, shape index: {}]
  %s12 = inlined_call_operand.hbm [shape: f32[8,32], index: 12, kind: output, shape index: {}]
  %s13 = sld [smem:[#allocation0]]
  $region109: #{tpu_custom_call.1} parent=0
    _
  %s15 = ssub.s32 1, %s13
  %s16 = scalar_select 0, %s15, %s13
  $region1: #{tpu_custom_call.1} parent=0
    #allocation3 [shape = 'u8[8192]{0}', space=vmem, size = 0x2000, scoped, tag = 'input window, operand 0']
    #allocation4 [shape = 's32[2]{0}', space=sflag, size = 0x8, scoped, tag = 'scoped memory for tpu_custom_call.1']
    #allocation5 [shape = 's32[2]{0}', space=sflag, size = 0x8, scoped, tag = 'scoped memory for tpu_custom_call.1']
    #allocation6 [shape = 'u8[4096]{0}', space=vmem, size = 0x1000, scoped, tag = 'input window, operand 4, single buffered']
    #allocation7 [shape = 's32[1]{0}', space=sflag, size = 0x4, scoped, tag = 'scoped memory for tpu_custom_call.1']
    #allocation8 [shape = 'u8[8192]{0}', space=vmem, size = 0x2000, scoped, tag = 'input window, operand 5, single buffered']
    #allocation9 [shape = 'u8[512]{0}', space=vmem, size = 0x400, scoped, tag = 'input window, operand 8, single buffered']
    #allocation10 [shape = 's32[1]{0}', space=sflag, size = 0x4, scoped, tag = 'scoped memory for tpu_custom_call.1']
    #allocation11 [shape = 'u8[16384]{0}', space=vmem, size = 0x4000, scoped, tag = 'input window, operand 10, single buffered']
    #allocation12 [shape = 'u8[4096]{0}', space=vmem, size = 0x1000, scoped, tag = 'output window, operand 0, single buffered']
    %17 = vsyncpa [#allocation4], 0
    %s18 = scalar_lea.sflag [#allocation4], 1
    %19 = vsyncpa %s18, 0
    %20 = vsyncpa [#allocation7], 0
    %21 = vsyncpa [#allocation10], 0
    %22 = vsyncpa [#allocation5], 0
    loop: start=0, step=1, limit=4
    $region2: #{tpu_custom_call.1} parent=1 // loop_pre_header
      _
    $region3: #{tpu_custom_call.1} parent=1 // loop_header
      %s24 = sphi 0, %s28
      %p25 = scmp.ge.s32.totalorder %s24, 4
      %s34 = sphi 0, %s36
      %s37 = sphi 0, %s34
      %s38 = sphi 0, %s37
      %s54 = sphi 0, %s38
      %s60 = sphi 0, %s62
      %s63 = sphi 0, %s60
      %s64 = sphi 0, %s63
      %s80 = sphi 0, %s64
      %s86 = sphi 0, %s88
      %s89 = sphi 0, %s86
      %s90 = sphi 0, %s89
      %s106 = sphi 0, %s90
      %s112 = sphi 0, %s114
      %s115 = sphi 0, %s112
      %s116 = sphi 0, %s115
      %s132 = sphi 0, %s116
      %s136 = sphi 0, %s136
      %s138 = sphi 0, %s136
      %s139 = sphi 0, %s138
      %s153 = sphi 0, %s139
      %s157 = sphi 0, %s157
      %s159 = sphi 0, %s157
      %s160 = sphi 0, %s159
      %s174 = sphi 0, %s160
      %s178 = sphi 0, %s178
      %s180 = sphi 0, %s178
      %s181 = sphi 0, %s180
      %s195 = sphi 0, %s181
      %s199 = sphi 0, %s199
      %s201 = sphi 0, %s199
      %s202 = sphi 0, %s201
      %s216 = sphi 0, %s202
      %s220 = sphi 0, %s220
      %s222 = sphi 0, %s220
      %s223 = sphi 0, %s222
      %s237 = sphi 0, %s223
      %s241 = sphi 0, %s241
      %s243 = sphi 0, %s241
      %s244 = sphi 0, %s243
      %s258 = sphi 0, %s244
      %s262 = sphi 0, %s262
      %s264 = sphi 0, %s262
      %s265 = sphi 0, %s264
      %s279 = sphi 0, %s265
      %s283 = sphi 0, %s283
      %s285 = sphi 0, %s283
      %s286 = sphi 0, %s285
      %s300 = sphi 0, %s286
      %s304 = sphi 0, %s304
      %s306 = sphi 0, %s304
      %s307 = sphi 0, %s306
      %s321 = sphi 0, %s307
    $region4: #{tpu_custom_call.1} parent=1 // loop_header_branch
      %27 = sbr.rel (%p25) target = $region8
    $region5: #{tpu_custom_call.1} parent=1 // loop_body
      %s29 = ssub.s32 %s24, 1
      %s30 = ssub.s32 %s24, 2
      %s31 = sadd.s32 %s24, 1
      %s32 = ssub.s32 %s24, %s31
      %p33 = scmp.eq.s32.totalorder %s32, 0
      %s35 = sadd.s32 %s34, 1
      %s36 = scalar_select %p33, %s34, %s35
      %p39 = pneg %p33
      %p40 = scmp.eq.s32.totalorder %s24, 1
      %p41 = por %p39, %p40
      %p42 = scmp.ne.s32.totalorder %s34, %s37
      %p43 = scmp.eq.s32.totalorder %s24, 0
      %p44 = por %p42, %p43
      %p45 = scmp.ne.s32.totalorder %s34, %s37
      %p46 = scmp.eq.s32.totalorder %s29, 1
      %p47 = por %p45, %p46
      %p48 = scmp.ne.s32.totalorder %s37, %s38
      %p49 = scmp.eq.s32.totalorder %s29, 0
      %p50 = por %p48, %p49
      %p51 = scmp.ne.s32.totalorder %s37, %s38
      %p52 = scmp.eq.s32.totalorder %s30, 1
      %p53 = por %p51, %p52
      %p55 = scmp.ne.s32.totalorder %s38, %s54
      %p56 = scmp.eq.s32.totalorder %s30, 0
      %p57 = por %p55, %p56
      %s58 = ssub.s32 %s24, %s31
      %p59 = scmp.eq.s32.totalorder %s58, 0
      %s61 = sadd.s32 %s60, 1
      %s62 = scalar_select %p59, %s60, %s61
      %p65 = pneg %p59
      %p66 = scmp.eq.s32.totalorder %s24, 1
      %p67 = por %p65, %p66
      %p68 = scmp.ne.s32.totalorder %s60, %s63
      %p69 = scmp.eq.s32.totalorder %s24, 0
      %p70 = por %p68, %p69
      %p71 = scmp.ne.s32.totalorder %s60, %s63
      %p72 = scmp.eq.s32.totalorder %s29, 1
      %p73 = por %p71, %p72
      %p74 = scmp.ne.s32.totalorder %s63, %s64
      %p75 = scmp.eq.s32.totalorder %s29, 0
      %p76 = por %p74, %p75
      %p77 = scmp.ne.s32.totalorder %s63, %s64
      %p78 = scmp.eq.s32.totalorder %s30, 1
      %p79 = por %p77, %p78
      %p81 = scmp.ne.s32.totalorder %s64, %s80
      %p82 = scmp.eq.s32.totalorder %s30, 0
      %p83 = por %p81, %p82
      %s84 = ssub.s32 %s24, %s31
      %p85 = scmp.eq.s32.totalorder %s84, 0
      %s87 = sadd.s32 %s86, 1
      %s88 = scalar_select %p85, %s86, %s87
      %p91 = pneg %p85
      %p92 = scmp.eq.s32.totalorder %s24, 1
      %p93 = por %p91, %p92
      %p94 = scmp.ne.s32.totalorder %s86, %s89
      %p95 = scmp.eq.s32.totalorder %s24, 0
      %p96 = por %p94, %p95
      %p97 = scmp.ne.s32.totalorder %s86, %s89
      %p98 = scmp.eq.s32.totalorder %s29, 1
      %p99 = por %p97, %p98
      %p100 = scmp.ne.s32.totalorder %s89, %s90
      %p101 = scmp.eq.s32.totalorder %s29, 0
      %p102 = por %p100, %p101
      %p103 = scmp.ne.s32.totalorder %s89, %s90
      %p104 = scmp.eq.s32.totalorder %s30, 1
      %p105 = por %p103, %p104
      %p107 = scmp.ne.s32.totalorder %s90, %s106
      %p108 = scmp.eq.s32.totalorder %s30, 0
      %p109 = por %p107, %p108
      %s110 = ssub.s32 %s24, %s31
      %p111 = scmp.eq.s32.totalorder %s110, 0
      %s113 = sadd.s32 %s112, 1
      %s114 = scalar_select %p111, %s112, %s113
      %p117 = pneg %p111
      %p118 = scmp.eq.s32.totalorder %s24, 1
      %p119 = por %p117, %p118
      %p120 = scmp.ne.s32.totalorder %s112, %s115
      %p121 = scmp.eq.s32.totalorder %s24, 0
      %p122 = por %p120, %p121
      %p123 = scmp.ne.s32.totalorder %s112, %s115
      %p124 = scmp.eq.s32.totalorder %s29, 1
      %p125 = por %p123, %p124
      %p126 = scmp.ne.s32.totalorder %s115, %s116
      %p127 = scmp.eq.s32.totalorder %s29, 0
      %p128 = por %p126, %p127
      %p129 = scmp.ne.s32.totalorder %s115, %s116
      %p130 = scmp.eq.s32.totalorder %s30, 1
      %p131 = por %p129, %p130
      %p133 = scmp.ne.s32.totalorder %s116, %s132
      %p134 = scmp.eq.s32.totalorder %s30, 0
      %p135 = por %p133, %p134
      %s137 = sadd.s32 %s136, 1
      %p140 = scmp.eq.s32.totalorder %s24, 1
      %p141 = scmp.ne.s32.totalorder %s136, %s138
      %p142 = scmp.eq.s32.totalorder %s24, 0
      %p143 = por %p141, %p142
      %p144 = scmp.ne.s32.totalorder %s136, %s138
      %p145 = scmp.eq.s32.totalorder %s29, 1
      %p146 = por %p144, %p145
      %p147 = scmp.ne.s32.totalorder %s138, %s139
      %p148 = scmp.eq.s32.totalorder %s29, 0
      %p149 = por %p147, %p148
      %p150 = scmp.ne.s32.totalorder %s138, %s139
      %p151 = scmp.eq.s32.totalorder %s30, 1
      %p152 = por %p150, %p151
      %p154 = scmp.ne.s32.totalorder %s139, %s153
      %p155 = scmp.eq.s32.totalorder %s30, 0
      %p156 = por %p154, %p155
      %s158 = sadd.s32 %s157, 1
      %p161 = scmp.eq.s32.totalorder %s24, 1
      %p162 = scmp.ne.s32.totalorder %s157, %s159
      %p163 = scmp.eq.s32.totalorder %s24, 0
      %p164 = por %p162, %p163
      %p165 = scmp.ne.s32.totalorder %s157, %s159
      %p166 = scmp.eq.s32.totalorder %s29, 1
      %p167 = por %p165, %p166
      %p168 = scmp.ne.s32.totalorder %s159, %s160
      %p169 = scmp.eq.s32.totalorder %s29, 0
      %p170 = por %p168, %p169
      %p171 = scmp.ne.s32.totalorder %s159, %s160
      %p172 = scmp.eq.s32.totalorder %s30, 1
      %p173 = por %p171, %p172
      %p175 = scmp.ne.s32.totalorder %s160, %s174
      %p176 = scmp.eq.s32.totalorder %s30, 0
      %p177 = por %p175, %p176
      %s179 = sadd.s32 %s178, 1
      %p182 = scmp.eq.s32.totalorder %s24, 1
      %p183 = scmp.ne.s32.totalorder %s178, %s180
      %p184 = scmp.eq.s32.totalorder %s24, 0
      %p185 = por %p183, %p184
      %p186 = scmp.ne.s32.totalorder %s178, %s180
      %p187 = scmp.eq.s32.totalorder %s29, 1
      %p188 = por %p186, %p187
      %p189 = scmp.ne.s32.totalorder %s180, %s181
      %p190 = scmp.eq.s32.totalorder %s29, 0
      %p191 = por %p189, %p190
      %p192 = scmp.ne.s32.totalorder %s180, %s181
      %p193 = scmp.eq.s32.totalorder %s30, 1
      %p194 = por %p192, %p193
      %p196 = scmp.ne.s32.totalorder %s181, %s195
      %p197 = scmp.eq.s32.totalorder %s30, 0
      %p198 = por %p196, %p197
      %s200 = sadd.s32 %s199, 1
      %p203 = scmp.eq.s32.totalorder %s24, 1
      %p204 = scmp.ne.s32.totalorder %s199, %s201
      %p205 = scmp.eq.s32.totalorder %s24, 0
      %p206 = por %p204, %p205
      %p207 = scmp.ne.s32.totalorder %s199, %s201
      %p208 = scmp.eq.s32.totalorder %s29, 1
      %p209 = por %p207, %p208
      %p210 = scmp.ne.s32.totalorder %s201, %s202
      %p211 = scmp.eq.s32.totalorder %s29, 0
      %p212 = por %p210, %p211
      %p213 = scmp.ne.s32.totalorder %s201, %s202
      %p214 = scmp.eq.s32.totalorder %s30, 1
      %p215 = por %p213, %p214
      %p217 = scmp.ne.s32.totalorder %s202, %s216
      %p218 = scmp.eq.s32.totalorder %s30, 0
      %p219 = por %p217, %p218
      %s221 = sadd.s32 %s220, 1
      %p224 = scmp.eq.s32.totalorder %s24, 1
      %p225 = scmp.ne.s32.totalorder %s220, %s222
      %p226 = scmp.eq.s32.totalorder %s24, 0
      %p227 = por %p225, %p226
      %p228 = scmp.ne.s32.totalorder %s220, %s222
      %p229 = scmp.eq.s32.totalorder %s29, 1
      %p230 = por %p228, %p229
      %p231 = scmp.ne.s32.totalorder %s222, %s223
      %p232 = scmp.eq.s32.totalorder %s29, 0
      %p233 = por %p231, %p232
      %p234 = scmp.ne.s32.totalorder %s222, %s223
      %p235 = scmp.eq.s32.totalorder %s30, 1
      %p236 = por %p234, %p235
      %p238 = scmp.ne.s32.totalorder %s223, %s237
      %p239 = scmp.eq.s32.totalorder %s30, 0
      %p240 = por %p238, %p239
      %s242 = sadd.s32 %s241, 1
      %p245 = scmp.eq.s32.totalorder %s24, 1
      %p246 = scmp.ne.s32.totalorder %s241, %s243
      %p247 = scmp.eq.s32.totalorder %s24, 0
      %p248 = por %p246, %p247
      %p249 = scmp.ne.s32.totalorder %s241, %s243
      %p250 = scmp.eq.s32.totalorder %s29, 1
      %p251 = por %p249, %p250
      %p252 = scmp.ne.s32.totalorder %s243, %s244
      %p253 = scmp.eq.s32.totalorder %s29, 0
      %p254 = por %p252, %p253
      %p255 = scmp.ne.s32.totalorder %s243, %s244
      %p256 = scmp.eq.s32.totalorder %s30, 1
      %p257 = por %p255, %p256
      %p259 = scmp.ne.s32.totalorder %s244, %s258
      %p260 = scmp.eq.s32.totalorder %s30, 0
      %p261 = por %p259, %p260
      %s263 = sadd.s32 %s262, 1
      %p266 = scmp.eq.s32.totalorder %s24, 1
      %p267 = scmp.ne.s32.totalorder %s262, %s264
      %p268 = scmp.eq.s32.totalorder %s24, 0
      %p269 = por %p267, %p268
      %p270 = scmp.ne.s32.totalorder %s262, %s264
      %p271 = scmp.eq.s32.totalorder %s29, 1
      %p272 = por %p270, %p271
      %p273 = scmp.ne.s32.totalorder %s264, %s265
      %p274 = scmp.eq.s32.totalorder %s29, 0
      %p275 = por %p273, %p274
      %p276 = scmp.ne.s32.totalorder %s264, %s265
      %p277 = scmp.eq.s32.totalorder %s30, 1
      %p278 = por %p276, %p277
      %p280 = scmp.ne.s32.totalorder %s265, %s279
      %p281 = scmp.eq.s32.totalorder %s30, 0
      %p282 = por %p280, %p281
      %s284 = sadd.s32 %s283, 1
      %p287 = scmp.eq.s32.totalorder %s24, 1
      %p288 = scmp.ne.s32.totalorder %s283, %s285
      %p289 = scmp.eq.s32.totalorder %s24, 0
      %p290 = por %p288, %p289
      %p291 = scmp.ne.s32.totalorder %s283, %s285
      %p292 = scmp.eq.s32.totalorder %s29, 1
      %p293 = por %p291, %p292
      %p294 = scmp.ne.s32.totalorder %s285, %s286
      %p295 = scmp.eq.s32.totalorder %s29, 0
      %p296 = por %p294, %p295
      %p297 = scmp.ne.s32.totalorder %s285, %s286
      %p298 = scmp.eq.s32.totalorder %s30, 1
      %p299 = por %p297, %p298
      %p301 = scmp.ne.s32.totalorder %s286, %s300
      %p302 = scmp.eq.s32.totalorder %s30, 0
      %p303 = por %p301, %p302
      %s305 = sadd.s32 %s304, 1
      %p308 = scmp.eq.s32.totalorder %s24, 1
      %p309 = scmp.ne.s32.totalorder %s304, %s306
      %p310 = scmp.eq.s32.totalorder %s24, 0
      %p311 = por %p309, %p310
      %p312 = scmp.ne.s32.totalorder %s304, %s306
      %p313 = scmp.eq.s32.totalorder %s29, 1
      %p314 = por %p312, %p313
      %p315 = scmp.ne.s32.totalorder %s306, %s307
      %p316 = scmp.eq.s32.totalorder %s29, 0
      %p317 = por %p315, %p316
      %p318 = scmp.ne.s32.totalorder %s306, %s307
      %p319 = scmp.eq.s32.totalorder %s30, 1
      %p320 = por %p318, %p319
      %p322 = scmp.ne.s32.totalorder %s307, %s321
      %p323 = scmp.eq.s32.totalorder %s30, 0
      %p324 = por %p322, %p323
      %p325 = scmp.le.s32.totalorder 1, %s24
      %p326 = scmp.lt.s32.totalorder %s24, 3
      %p327 = pnand %p325, %p326
      %p328 = pneg %p327
      // Predicated region
      $region9: #{tpu_custom_call.1} parent=5 // pred_check
        _
      $region10: #{tpu_custom_call.1} parent=5 // pred_check_branch
        %330 = sbr.rel (%p327) target = $region12
      $region11: #{tpu_custom_call.1} parent=5 // pred_region
        %s331 = ssub.s32 %s24, 1
        // Predicated region
        $region13: #{tpu_custom_call.1} parent=11 // pred_check
          %p332 = pneg %p149
        $region14: #{tpu_custom_call.1} parent=11 // pred_check_branch
          %334 = sbr.rel (%p332) target = $region16
        $region15: #{tpu_custom_call.1} parent=11 // pred_region
          %s336 = ssub.s32 128, 128
          %337 = vsyncadd [#allocation7], %s336
          %s339 = sshll.u32 [#allocation6], 4
          %s340 = int_to_ptr.vmem [resolvable:$true] %s339
          %342 = dma.hbm_to_vmem [thread:$0]  %s4, 128, %s340, [#allocation7]
        $region16: #{tpu_custom_call.1} parent=11 // pred_fallthru
          _
        // Predicated region
        $region17: #{tpu_custom_call.1} parent=11 // pred_check
          %p343 = pneg %p170
        $region18: #{tpu_custom_call.1} parent=11 // pred_check_branch
          %345 = sbr.rel (%p343) target = $region20
        $region19: #{tpu_custom_call.1} parent=11 // pred_region
          %s347 = ssub.s32 256, 256
          %348 = vsyncadd [#allocation7], %s347
          %s349 = sshll.u32 [#allocation8], 4
          %s350 = int_to_ptr.vmem [resolvable:$true] %s349
          %355 = dma.hbm_to_vmem [thread:$0]  %s5, 256, %s350, [#allocation7], 128, 128, 8
        $region20: #{tpu_custom_call.1} parent=11 // pred_fallthru
          _
        // Predicated region
        $region21: #{tpu_custom_call.1} parent=11 // pred_check
          %p356 = pneg %p191
        $region22: #{tpu_custom_call.1} parent=11 // pred_check_branch
          %358 = sbr.rel (%p356) target = $region24
        $region23: #{tpu_custom_call.1} parent=11 // pred_region
          _
        $region24: #{tpu_custom_call.1} parent=11 // pred_fallthru
          _
        // Predicated region
        $region25: #{tpu_custom_call.1} parent=11 // pred_check
          %p359 = pneg %p212
        $region26: #{tpu_custom_call.1} parent=11 // pred_check_branch
          %361 = sbr.rel (%p359) target = $region28
        $region27: #{tpu_custom_call.1} parent=11 // pred_region
          _
        $region28: #{tpu_custom_call.1} parent=11 // pred_fallthru
          _
        // Predicated region
        $region29: #{tpu_custom_call.1} parent=11 // pred_check
          %p362 = pneg %p233
        $region30: #{tpu_custom_call.1} parent=11 // pred_check_branch
          %364 = sbr.rel (%p362) target = $region32
        $region31: #{tpu_custom_call.1} parent=11 // pred_region
          %s366 = ssub.s32 16, 16
          %367 = vsyncadd [#allocation10], %s366
          %s369 = sshll.u32 [#allocation9], 4
          %s370 = int_to_ptr.vmem [resolvable:$true] %s369
          %372 = dma.hbm_to_vmem [thread:$0]  %s8, 16, %s370, [#allocation10]
        $region32: #{tpu_custom_call.1} parent=11 // pred_fallthru
          _
        // Predicated region
        $region33: #{tpu_custom_call.1} parent=11 // pred_check
          %p373 = pneg %p254
        $region34: #{tpu_custom_call.1} parent=11 // pred_check_branch
          %375 = sbr.rel (%p373) target = $region36
        $region35: #{tpu_custom_call.1} parent=11 // pred_region
          _
        $region36: #{tpu_custom_call.1} parent=11 // pred_fallthru
          _
        // Predicated region
        $region37: #{tpu_custom_call.1} parent=11 // pred_check
          %p376 = pneg %p275
        $region38: #{tpu_custom_call.1} parent=11 // pred_check_branch
          %378 = sbr.rel (%p376) target = $region40
        $region39: #{tpu_custom_call.1} parent=11 // pred_region
          %s380 = ssub.s32 512, 512
          %381 = vsyncadd [#allocation10], %s380
          %s382 = sshll.u32 [#allocation11], 4
          %s383 = int_to_ptr.vmem [resolvable:$true] %s382
          %388 = dma.hbm_to_vmem [thread:$0]  %s10, 512, %s383, [#allocation10], 128, 128, 8
        $region40: #{tpu_custom_call.1} parent=11 // pred_fallthru
          _
        // Predicated region
        $region41: #{tpu_custom_call.1} parent=11 // pred_check
          %p389 = pneg %p296
        $region42: #{tpu_custom_call.1} parent=11 // pred_check_branch
          %391 = sbr.rel (%p389) target = $region44
        $region43: #{tpu_custom_call.1} parent=11 // pred_region
          _
        $region44: #{tpu_custom_call.1} parent=11 // pred_fallthru
          _
      $region12: #{tpu_custom_call.1} parent=5 // pred_fallthru
        _
      %p392 = scmp.lt.s32.totalorder %s24, 2
      // Predicated region
      $region45: #{tpu_custom_call.1} parent=5 // pred_check
        %p393 = pneg %p392
      $region46: #{tpu_custom_call.1} parent=5 // pred_check_branch
        %395 = sbr.rel (%p393) target = $region48
      $region47: #{tpu_custom_call.1} parent=5 // pred_region
        // Predicated region
        $region49: #{tpu_custom_call.1} parent=47 // pred_check
          %p396 = pneg %p44
        $region50: #{tpu_custom_call.1} parent=47 // pred_check_branch
          %398 = sbr.rel (%p396) target = $region52
        $region51: #{tpu_custom_call.1} parent=47 // pred_region
          %s399 = sand.u32 %s34, 1
          %s400 = scalar_lea.sflag [#allocation4], %s399
          %s401 = sand.u32 %s34, 1
          %s402 = smul.addr %s401, 8
          %s403 = scalar_lea.vmem [#allocation3], %s402
          %s405 = ssub.s32 128, 128
          %406 = vsyncadd %s400, %s405
          %s407 = smul.addr %s24, 128
          %s408 = scalar_lea.hbm %s0, %s407
          %s410 = sshll.u32 %s403, 4
          %s411 = int_to_ptr.vmem [resolvable:$true] %s410
          %413 = dma.hbm_to_vmem [thread:$0]  %s408, 128, %s411, %s400
        $region52: #{tpu_custom_call.1} parent=47 // pred_fallthru
          _
        // Predicated region
        $region53: #{tpu_custom_call.1} parent=47 // pred_check
          %p414 = pneg %p70
        $region54: #{tpu_custom_call.1} parent=47 // pred_check_branch
          %416 = sbr.rel (%p414) target = $region56
        $region55: #{tpu_custom_call.1} parent=47 // pred_region
          %p417 = scmp.lt.s32.totalorder %s24, 1
          %s418 = scalar_select %p417, %s24, 1
          %s419 = smul.addr %s418, 8
          %s420 = scalar_lea.vmem %s1, %s419
        $region56: #{tpu_custom_call.1} parent=47 // pred_fallthru
          _
        // Predicated region
        $region57: #{tpu_custom_call.1} parent=47 // pred_check
          %p421 = pneg %p96
        $region58: #{tpu_custom_call.1} parent=47 // pred_check_branch
          %423 = sbr.rel (%p421) target = $region60
        $region59: #{tpu_custom_call.1} parent=47 // pred_region
          %p424 = scmp.lt.s32.totalorder %s24, 1
          %s425 = scalar_select %p424, %s24, 1
          %s426 = smul.addr %s425, 8
          %s427 = scalar_lea.vmem %s2, %s426
        $region60: #{tpu_custom_call.1} parent=47 // pred_fallthru
          _
        // Predicated region
        $region61: #{tpu_custom_call.1} parent=47 // pred_check
          %p428 = pneg %p122
        $region62: #{tpu_custom_call.1} parent=47 // pred_check_branch
          %430 = sbr.rel (%p428) target = $region64
        $region63: #{tpu_custom_call.1} parent=47 // pred_region
          %p431 = scmp.lt.s32.totalorder %s24, 1
          %s432 = scalar_select %p431, %s24, 1
          %s433 = smul.addr %s432, 8
          %s434 = scalar_lea.vmem %s3, %s433
        $region64: #{tpu_custom_call.1} parent=47 // pred_fallthru
          _
      $region48: #{tpu_custom_call.1} parent=5 // pred_fallthru
        _
      %p435 = scmp.le.s32.totalorder 1, %s24
      %p436 = scmp.lt.s32.totalorder %s24, 3
      %p437 = pnand %p435, %p436
      %p438 = pneg %p437
      // Predicated region
      $region65: #{tpu_custom_call.1} parent=5 // pred_check
        _
      $region66: #{tpu_custom_call.1} parent=5 // pred_check_branch
        %440 = sbr.rel (%p437) target = $region68
      $region67: #{tpu_custom_call.1} parent=5 // pred_region
        %s441 = ssub.s32 %s24, 1
        %s442 = sand.u32 %s37, 1
        %s443 = scalar_lea.sflag [#allocation4], %s442
        %s444 = sand.u32 %s37, 1
        %s445 = smul.addr %s444, 8
        %s446 = scalar_lea.vmem [#allocation3], %s445
        // Predicated region
        $region69: #{tpu_custom_call.1} parent=67 // pred_check
          %p447 = pneg %p50
        $region70: #{tpu_custom_call.1} parent=67 // pred_check_branch
          %449 = sbr.rel (%p447) target = $region72
        $region71: #{tpu_custom_call.1} parent=67 // pred_region
          %450 = dma.done %s443, 128
        $region72: #{tpu_custom_call.1} parent=67 // pred_fallthru
          _
        // Predicated region
        $region73: #{tpu_custom_call.1} parent=67 // pred_check
          %p451 = pneg %p149
        $region74: #{tpu_custom_call.1} parent=67 // pred_check_branch
          %453 = sbr.rel (%p451) target = $region76
        $region75: #{tpu_custom_call.1} parent=67 // pred_region
          %454 = dma.done [#allocation7], 128
        $region76: #{tpu_custom_call.1} parent=67 // pred_fallthru
          _
        // Predicated region
        $region77: #{tpu_custom_call.1} parent=67 // pred_check
          %p455 = pneg %p170
        $region78: #{tpu_custom_call.1} parent=67 // pred_check_branch
          %457 = sbr.rel (%p455) target = $region80
        $region79: #{tpu_custom_call.1} parent=67 // pred_region
          %458 = dma.done [#allocation7], 256
        $region80: #{tpu_custom_call.1} parent=67 // pred_fallthru
          _
        // Predicated region
        $region81: #{tpu_custom_call.1} parent=67 // pred_check
          %p459 = pneg %p233
        $region82: #{tpu_custom_call.1} parent=67 // pred_check_branch
          %461 = sbr.rel (%p459) target = $region84
        $region83: #{tpu_custom_call.1} parent=67 // pred_region
          %462 = dma.done [#allocation10], 16
        $region84: #{tpu_custom_call.1} parent=67 // pred_fallthru
          _
        // Predicated region
        $region85: #{tpu_custom_call.1} parent=67 // pred_check
          %p463 = pneg %p275
        $region86: #{tpu_custom_call.1} parent=67 // pred_check_branch
          %465 = sbr.rel (%p463) target = $region88
        $region87: #{tpu_custom_call.1} parent=67 // pred_region
          %466 = dma.done [#allocation10], 512
        $region88: #{tpu_custom_call.1} parent=67 // pred_fallthru
          _
        %s467 = sand.u32 %s37, 1
        %s468 = scalar_lea.sflag [#allocation4], %s467
        %s469 = sand.u32 %s37, 1
        %s470 = smul.addr %s469, 8
        %s471 = scalar_lea.vmem [#allocation3], %s470
        %p472 = pneg %p50
        %p473 = pneg %p47
        %p474 = scmp.lt.s32.totalorder %s29, 1
        %s475 = scalar_select %p474, %s29, 1
        %s476 = smul.addr %s475, 8
        %s477 = scalar_lea.vmem %s1, %s476
        %p478 = pneg %p76
        %p479 = pneg %p73
        %p480 = scmp.lt.s32.totalorder %s29, 1
        %s481 = scalar_select %p480, %s29, 1
        %s482 = smul.addr %s481, 8
        %s483 = scalar_lea.vmem %s2, %s482
        %p484 = pneg %p102
        %p485 = pneg %p99
        %p486 = scmp.lt.s32.totalorder %s29, 1
        %s487 = scalar_select %p486, %s29, 1
        %s488 = smul.addr %s487, 8
        %s489 = scalar_lea.vmem %s3, %s488
        %p490 = pneg %p128
        %p491 = pneg %p125
        %p492 = pneg %p149
        %p493 = pneg %p146
        %p494 = pneg %p170
        %p495 = pneg %p167
        %p496 = pneg %p191
        %p497 = pneg %p188
        %p498 = pneg %p212
        %p499 = pneg %p209
        %p500 = pneg %p233
        %p501 = pneg %p230
        %p502 = pneg %p254
        %p503 = pneg %p251
        %p504 = pneg %p275
        %p505 = pneg %p272
        %p506 = pneg %p296
        %p507 = pneg %p293
        %p508 = pneg %p317
        %p509 = pneg %p314
        %p510 = scmp.lt.s32.totalorder %s29, 1
        %s511 = scalar_select %p510, %s29, 1
        %s512 = smul.addr %s511, 8
        %s513 = scalar_lea.vmem %s1, %s512
        %p514 = scmp.lt.s32.totalorder %s29, 1
        %s515 = scalar_select %p514, %s29, 1
        %s516 = smul.addr %s515, 8
        %s517 = scalar_lea.vmem %s2, %s516
        %p518 = scmp.lt.s32.totalorder %s29, 1
        %s519 = scalar_select %p518, %s29, 1
        %s520 = smul.addr %s519, 8
        %s521 = scalar_lea.vmem %s3, %s520
        %p522 = scmp.eq.s32.totalorder %s29, 0
        // Predicated region
        $region89: #{tpu_custom_call.1} parent=67 // pred_check
          %p523 = pneg %p522
        $region90: #{tpu_custom_call.1} parent=67 // pred_check_branch
          %525 = sbr.rel (%p523) target = $region92
        $region91: #{tpu_custom_call.1} parent=67 // pred_region
          %vm526 = vcmask 261120
          %527 = vst.msk [vmem:[#allocation2] sm:$0xff] %vm526, 0.0
        $region92: #{tpu_custom_call.1} parent=67 // pred_fallthru
          _
        %v528 = vld [vmem:[%s446] sm:$0xff]
        %v529 = vld [vmem:[%s513] sm:$0xff]
        %v530 = vld [vmem:[#allocation6] sm:$0xff]
        %v531 = vld [vmem:[#allocation8] sm:$0xff]
        %v532 = vld [vmem:[#allocation8 + $0x8] sm:$0xff]
        %v533 = vld [vmem:[%s6] sm:$0x1]
        %v535 = vlaneseq
        %v536 = vshrl.u32 %v535, 7
        %v537 = vsub.s32 0, %v536
        %v538 = vrot.slane %v533, %v537
        %vm540 = vcmask 130048
        %v542 = vsel %vm540, %v528, 0
        %544 = vmatprep.subr.mxu0 0.0
        %545 = vmatpush1.msra.mxu0 0.0
        %546 = vmatprep.subr.mxu0 0.0
        %547 = vmatpush1.msra.mxu0 0.0
        %548 = vmatprep.subr.mxu0 0.0
        %549 = vmatpush1.msra.mxu0 0.0
        %550 = vmatprep.subr.mxu0 0.0
        %551 = vmatpush1.msra.mxu0 0.0
        %552 = vmatprep.subr.mxu0 0.0
        %553 = vmatpush1.msra.mxu0 0.0
        %554 = vmatprep.subr.mxu0 0.0
        %555 = vmatpush1.msra.mxu0 0.0
        %556 = vmatprep.subr.mxu0 0.0
        %557 = vmatpush1.msra.mxu0 0.0
        %558 = vmatprep.subr.mxu0 0.0
        %559 = vmatpush1.msra.mxu0 0.0
        %560 = vmatprep.subr.mxu0 0.0
        %561 = vmatpush1.msra.mxu0 0.0
        %562 = vmatprep.subr.mxu0 0.0
        %563 = vmatpush1.msra.mxu0 0.0
        %564 = vmatprep.subr.mxu0 0.0
        %565 = vmatpush1.msra.mxu0 0.0
        %566 = vmatprep.subr.mxu0 0.0
        %567 = vmatpush1.msra.mxu0 0.0
        %568 = vmatprep.subr.mxu0 0.0
        %569 = vmatpush1.msra.mxu0 0.0
        %570 = vmatprep.subr.mxu0 0.0
        %571 = vmatpush1.msra.mxu0 0.0
        %572 = vmatprep.subr.mxu0 0.0
        %573 = vmatpush1.msra.mxu0 %v532
        %574 = vmatprep.subr.mxu0 0.0
        %575 = vmatpush1.msra.mxu0 %v531
        %576 = vmatprep.subr.mxu0 0.0
        %577 = vmatpush2.msra.mxu0 0.0
        %578 = vmatprep.subr.mxu0 0.0
        %579 = vmatpush2.msra.mxu0 0.0
        %580 = vmatprep.subr.mxu0 0.0
        %581 = vmatpush2.msra.mxu0 0.0
        %582 = vmatprep.subr.mxu0 0.0
        %583 = vmatpush2.msra.mxu0 0.0
        %584 = vmatprep.subr.mxu0 0.0
        %585 = vmatpush2.msra.mxu0 0.0
        %586 = vmatprep.subr.mxu0 0.0
        %587 = vmatpush2.msra.mxu0 0.0
        %588 = vmatprep.subr.mxu0 0.0
        %589 = vmatpush2.msra.mxu0 0.0
        %590 = vmatprep.subr.mxu0 0.0
        %591 = vmatpush2.msra.mxu0 0.0
        %592 = vmatprep.subr.mxu0 0.0
        %593 = vmatpush2.msra.mxu0 0.0
        %594 = vmatprep.subr.mxu0 0.0
        %595 = vmatpush2.msra.mxu0 0.0
        %596 = vmatprep.subr.mxu0 0.0
        %597 = vmatpush2.msra.mxu0 0.0
        %598 = vmatprep.subr.mxu0 0.0
        %599 = vmatpush2.msra.mxu0 0.0
        %600 = vmatprep.subr.mxu0 0.0
        %601 = vmatpush2.msra.mxu0 0.0
        %602 = vmatprep.subr.mxu0 0.0
        %603 = vmatpush2.msra.mxu0 0.0
        %604 = vmatprep.subr.mxu0 0.0
        %605 = vmatpush2.msra.mxu0 0.0
        %606 = vmatprep.subr.mxu0 0.0
        %607 = vmatpush2.msra.mxu0 0.0
        %608 = vmatprep.mubr.f32.mxu0 0.0
        %609 = vmatmul.mubr.f32.gmra.mxu0 %v542
        %v610 = vpop.f32.mrf.mxu0
        %v611 = vadd.f32 %v538, %v610
        %v612 = vpop.f32.mrf.mxu0
        %613 = vdwg.mxu0
        %v614 = vmax.f32 %v611, 0.0
        %vm615 = vcmp.ne.f32.partialorder %v611, %v611
        %v616 = vadd.f32 %v611, 0.0
        %v617 = vand.u32 2147483647, %v611
        %v618 = vsub.f32 0.0, %v617
        %v619 = vmul.f32 %v618, 1.442695
        %v620 = vpow.pop %v619
        %v621 = vadd.f32 %v620, 1.0
        %v622 = vlog2.pop %v621
        %v623 = vmul.f32 %v622, 0.6931472
        %v624 = vmul.f32 -0.5, %v620
        %v625 = vadd.f32 %v624, 1.0
        %v626 = vmul.f32 %v625, %v620
        %v627 = vand.u32 2147483647, %v620
        %vm628 = vcmp.lt.f32.partialorder %v627, 0.0004427343
        %v629 = vsel %vm628, %v626, %v623
        %v630 = vadd.f32 %v614, %v629
        %v631 = vsel %vm615, %v616, %v630
        %v632 = vsub.f32 %v631, 0.6931472
        %v633 = vld [vmem:[%s7] sm:$0xff]
        %v634 = vld [vmem:[%s7 + $0x8] sm:$0xff]
        %v635 = vld [vmem:[%s7 + $0x10] sm:$0xff]
        %v636 = vld [vmem:[%s7 + $0x18] sm:$0xff]
        %v637 = vld [vmem:[#allocation9] sm:$0x1]
        %v639 = vlaneseq
        %v640 = vshrl.u32 %v639, 7
        %v641 = vsub.s32 0, %v640
        %v642 = vrot.slane %v637, %v641
        %vm644 = vcmask 261120
        %v646 = vsel %vm644, %v632, 0
        %648 = vmatprep.subr.mxu0 0.0
        %649 = vmatpush1.msra.mxu0 0.0
        %650 = vmatprep.subr.mxu0 0.0
        %651 = vmatpush1.msra.mxu0 0.0
        %652 = vmatprep.subr.mxu0 0.0
        %653 = vmatpush1.msra.mxu0 0.0
        %654 = vmatprep.subr.mxu0 0.0
        %655 = vmatpush1.msra.mxu0 0.0
        %656 = vmatprep.subr.mxu0 0.0
        %657 = vmatpush1.msra.mxu0 0.0
        %658 = vmatprep.subr.mxu0 0.0
        %659 = vmatpush1.msra.mxu0 0.0
        %660 = vmatprep.subr.mxu0 0.0
        %661 = vmatpush1.msra.mxu0 0.0
        %662 = vmatprep.subr.mxu0 0.0
        %663 = vmatpush1.msra.mxu0 0.0
        %664 = vmatprep.subr.mxu0 0.0
        %665 = vmatpush1.msra.mxu0 0.0
        %666 = vmatprep.subr.mxu0 0.0
        %667 = vmatpush1.msra.mxu0 0.0
        %668 = vmatprep.subr.mxu0 0.0
        %669 = vmatpush1.msra.mxu0 0.0
        %670 = vmatprep.subr.mxu0 0.0
        %671 = vmatpush1.msra.mxu0 0.0
        %672 = vmatprep.subr.mxu0 0.0
        %673 = vmatpush1.msra.mxu0 %v636
        %674 = vmatprep.subr.mxu0 0.0
        %675 = vmatpush1.msra.mxu0 %v635
        %676 = vmatprep.subr.mxu0 0.0
        %677 = vmatpush1.msra.mxu0 %v634
        %678 = vmatprep.subr.mxu0 0.0
        %679 = vmatpush1.msra.mxu0 %v633
        %680 = vmatprep.subr.mxu0 0.0
        %681 = vmatpush2.msra.mxu0 0.0
        %682 = vmatprep.subr.mxu0 0.0
        %683 = vmatpush2.msra.mxu0 0.0
        %684 = vmatprep.subr.mxu0 0.0
        %685 = vmatpush2.msra.mxu0 0.0
        %686 = vmatprep.subr.mxu0 0.0
        %687 = vmatpush2.msra.mxu0 0.0
        %688 = vmatprep.subr.mxu0 0.0
        %689 = vmatpush2.msra.mxu0 0.0
        %690 = vmatprep.subr.mxu0 0.0
        %691 = vmatpush2.msra.mxu0 0.0
        %692 = vmatprep.subr.mxu0 0.0
        %693 = vmatpush2.msra.mxu0 0.0
        %694 = vmatprep.subr.mxu0 0.0
        %695 = vmatpush2.msra.mxu0 0.0
        %696 = vmatprep.subr.mxu0 0.0
        %697 = vmatpush2.msra.mxu0 0.0
        %698 = vmatprep.subr.mxu0 0.0
        %699 = vmatpush2.msra.mxu0 0.0
        %700 = vmatprep.subr.mxu0 0.0
        %701 = vmatpush2.msra.mxu0 0.0
        %702 = vmatprep.subr.mxu0 0.0
        %703 = vmatpush2.msra.mxu0 0.0
        %704 = vmatprep.subr.mxu0 0.0
        %705 = vmatpush2.msra.mxu0 0.0
        %706 = vmatprep.subr.mxu0 0.0
        %707 = vmatpush2.msra.mxu0 0.0
        %708 = vmatprep.subr.mxu0 0.0
        %709 = vmatpush2.msra.mxu0 0.0
        %710 = vmatprep.subr.mxu0 0.0
        %711 = vmatpush2.msra.mxu0 0.0
        %712 = vmatprep.mubr.f32.mxu0 0.0
        %713 = vmatmul.mubr.f32.gmra.mxu0 %v646
        %v714 = vpop.f32.mrf.mxu0
        %v715 = vadd.f32 %v642, %v714
        %v716 = vpop.f32.mrf.mxu0
        %717 = vdwg.mxu0
        %719 = vset.pattern.permute.xlu0 0
        %720 = vperm.xlu0 %719, %v529
        %v721 = vpop.permute.xlu0 %720
        %v723 = vmul.f32 %v715, %v721
        %v724 = vlaneseq
        %v725 = vand.u32 %v724, 127
        %v726 = vld [vmem:[%s517] sm:$0xff]
        %727 = vset.pattern.permute.xlu0 0
        %728 = vperm.xlu0 %727, %v726
        %v729 = vpop.permute.xlu0 %728
        %vm730 = vcmp.eq.s32.totalorder %v725, %v729
        %v731 = vsel %vm730, 1, 0
        %v732 = vcvt.s32.f32 %v731
        %vm733 = vcmask 64512
        %v735 = vsel %vm733, %v732, 0
        %737 = vmatprep.subr.mxu0 0.0
        %738 = vmatpush1.msra.mxu0 0.0
        %739 = vmatprep.subr.mxu0 0.0
        %740 = vmatpush1.msra.mxu0 0.0
        %741 = vmatprep.subr.mxu0 0.0
        %742 = vmatpush1.msra.mxu0 0.0
        %743 = vmatprep.subr.mxu0 0.0
        %744 = vmatpush1.msra.mxu0 0.0
        %745 = vmatprep.subr.mxu0 0.0
        %746 = vmatpush1.msra.mxu0 0.0
        %747 = vmatprep.subr.mxu0 0.0
        %748 = vmatpush1.msra.mxu0 0.0
        %749 = vmatprep.subr.mxu0 0.0
        %750 = vmatpush1.msra.mxu0 0.0
        %751 = vmatprep.subr.mxu0 0.0
        %752 = vmatpush1.msra.mxu0 0.0
        %753 = vmatprep.subr.mxu0 0.0
        %754 = vmatpush1.msra.mxu0 0.0
        %755 = vmatprep.subr.mxu0 0.0
        %756 = vmatpush1.msra.mxu0 0.0
        %757 = vmatprep.subr.mxu0 0.0
        %758 = vmatpush1.msra.mxu0 0.0
        %759 = vmatprep.subr.mxu0 0.0
        %760 = vmatpush1.msra.mxu0 0.0
        %761 = vmatprep.subr.mxu0 0.0
        %762 = vmatpush1.msra.mxu0 0.0
        %763 = vmatprep.subr.mxu0 0.0
        %764 = vmatpush1.msra.mxu0 0.0
        %765 = vmatprep.subr.mxu0 0.0
        %766 = vmatpush1.msra.mxu0 0.0
        %767 = vmatprep.subr.mxu0 0.0
        %768 = vmatpush1.msra.mxu0 %v530
        %769 = vmatprep.subr.mxu0 0.0
        %770 = vmatpush2.msra.mxu0 0.0
        %771 = vmatprep.subr.mxu0 0.0
        %772 = vmatpush2.msra.mxu0 0.0
        %773 = vmatprep.subr.mxu0 0.0
        %774 = vmatpush2.msra.mxu0 0.0
        %775 = vmatprep.subr.mxu0 0.0
        %776 = vmatpush2.msra.mxu0 0.0
        %777 = vmatprep.subr.mxu0 0.0
        %778 = vmatpush2.msra.mxu0 0.0
        %779 = vmatprep.subr.mxu0 0.0
        %780 = vmatpush2.msra.mxu0 0.0
        %781 = vmatprep.subr.mxu0 0.0
        %782 = vmatpush2.msra.mxu0 0.0
        %783 = vmatprep.subr.mxu0 0.0
        %784 = vmatpush2.msra.mxu0 0.0
        %785 = vmatprep.subr.mxu0 0.0
        %786 = vmatpush2.msra.mxu0 0.0
        %787 = vmatprep.subr.mxu0 0.0
        %788 = vmatpush2.msra.mxu0 0.0
        %789 = vmatprep.subr.mxu0 0.0
        %790 = vmatpush2.msra.mxu0 0.0
        %791 = vmatprep.subr.mxu0 0.0
        %792 = vmatpush2.msra.mxu0 0.0
        %793 = vmatprep.subr.mxu0 0.0
        %794 = vmatpush2.msra.mxu0 0.0
        %795 = vmatprep.subr.mxu0 0.0
        %796 = vmatpush2.msra.mxu0 0.0
        %797 = vmatprep.subr.mxu0 0.0
        %798 = vmatpush2.msra.mxu0 0.0
        %799 = vmatprep.subr.mxu0 0.0
        %800 = vmatpush2.msra.mxu0 0.0
        %801 = vmatprep.mubr.f32.mxu0 0.0
        %802 = vmatmul.mubr.f32.gmra.mxu0 %v735
        %v803 = vpop.f32.mrf.mxu0
        %v804 = vadd.f32 0.0, %v803
        %v805 = vpop.f32.mrf.mxu0
        %806 = vdwg.mxu0
        %v807 = vld [vmem:[%s9] sm:$0xff]
        %v808 = vld [vmem:[%s9 + $0x8] sm:$0xff]
        %v809 = vld [vmem:[%s9 + $0x10] sm:$0xff]
        %v810 = vld [vmem:[%s9 + $0x18] sm:$0xff]
        %v812 = vsel %vm644, %v804, 0
        %814 = vmatprep.subr.mxu0 0.0
        %815 = vmatpush1.msra.mxu0 0.0
        %816 = vmatprep.subr.mxu0 0.0
        %817 = vmatpush1.msra.mxu0 0.0
        %818 = vmatprep.subr.mxu0 0.0
        %819 = vmatpush1.msra.mxu0 0.0
        %820 = vmatprep.subr.mxu0 0.0
        %821 = vmatpush1.msra.mxu0 0.0
        %822 = vmatprep.subr.mxu0 0.0
        %823 = vmatpush1.msra.mxu0 0.0
        %824 = vmatprep.subr.mxu0 0.0
        %825 = vmatpush1.msra.mxu0 0.0
        %826 = vmatprep.subr.mxu0 0.0
        %827 = vmatpush1.msra.mxu0 0.0
        %828 = vmatprep.subr.mxu0 0.0
        %829 = vmatpush1.msra.mxu0 0.0
        %830 = vmatprep.subr.mxu0 0.0
        %831 = vmatpush1.msra.mxu0 0.0
        %832 = vmatprep.subr.mxu0 0.0
        %833 = vmatpush1.msra.mxu0 0.0
        %834 = vmatprep.subr.mxu0 0.0
        %835 = vmatpush1.msra.mxu0 0.0
        %836 = vmatprep.subr.mxu0 0.0
        %837 = vmatpush1.msra.mxu0 0.0
        %838 = vmatprep.subr.mxu0 0.0
        %839 = vmatpush1.msra.mxu0 %v810
        %840 = vmatprep.subr.mxu0 0.0
        %841 = vmatpush1.msra.mxu0 %v809
        %842 = vmatprep.subr.mxu0 0.0
        %843 = vmatpush1.msra.mxu0 %v808
        %844 = vmatprep.subr.mxu0 0.0
        %845 = vmatpush1.msra.mxu0 %v807
        %846 = vmatprep.subr.mxu0 0.0
        %847 = vmatpush2.msra.mxu0 0.0
        %848 = vmatprep.subr.mxu0 0.0
        %849 = vmatpush2.msra.mxu0 0.0
        %850 = vmatprep.subr.mxu0 0.0
        %851 = vmatpush2.msra.mxu0 0.0
        %852 = vmatprep.subr.mxu0 0.0
        %853 = vmatpush2.msra.mxu0 0.0
        %854 = vmatprep.subr.mxu0 0.0
        %855 = vmatpush2.msra.mxu0 0.0
        %856 = vmatprep.subr.mxu0 0.0
        %857 = vmatpush2.msra.mxu0 0.0
        %858 = vmatprep.subr.mxu0 0.0
        %859 = vmatpush2.msra.mxu0 0.0
        %860 = vmatprep.subr.mxu0 0.0
        %861 = vmatpush2.msra.mxu0 0.0
        %862 = vmatprep.subr.mxu0 0.0
        %863 = vmatpush2.msra.mxu0 0.0
        %864 = vmatprep.subr.mxu0 0.0
        %865 = vmatpush2.msra.mxu0 0.0
        %866 = vmatprep.subr.mxu0 0.0
        %867 = vmatpush2.msra.mxu0 0.0
        %868 = vmatprep.subr.mxu0 0.0
        %869 = vmatpush2.msra.mxu0 0.0
        %870 = vmatprep.subr.mxu0 0.0
        %871 = vmatpush2.msra.mxu0 0.0
        %872 = vmatprep.subr.mxu0 0.0
        %873 = vmatpush2.msra.mxu0 0.0
        %874 = vmatprep.subr.mxu0 0.0
        %875 = vmatpush2.msra.mxu0 0.0
        %876 = vmatprep.subr.mxu0 0.0
        %877 = vmatpush2.msra.mxu0 0.0
        %878 = vmatprep.mubr.f32.mxu0 0.0
        %879 = vmatmul.mubr.f32.gmra.mxu0 %v812
        %v880 = vpop.f32.mrf.mxu0
        %v881 = vadd.f32 0.0, %v880
        %v882 = vpop.f32.mrf.mxu0
        %883 = vdwg.mxu0
        %v884 = vmul.f32 %v723, %v881
        %v885 = vld [vmem:[%s521] sm:$0xff]
        %886 = vset.pattern.permute.xlu0 0
        %887 = vperm.xlu0 %886, %v885
        %v888 = vpop.permute.xlu0 %887
        %vm889 = vcmp.eq.s32.totalorder %v725, %v888
        %v890 = vsel %vm889, 1, 0
        %v891 = vcvt.s32.f32 %v890
        %v892 = vld [vmem:[#allocation2] sm:$0xff]
        %893 = vxpose.xlu0.b32.start [1/16] %v891, 128
        %894 = vxpose.xlu0.b32.cont [2/16] 0.0, 128
        %895 = vxpose.xlu0.b32.cont [3/16] 0.0, 128
        %896 = vxpose.xlu0.b32.cont [4/16] 0.0, 128
        %897 = vxpose.xlu0.b32.cont [5/16] 0.0, 128
        %898 = vxpose.xlu0.b32.cont [6/16] 0.0, 128
        %899 = vxpose.xlu0.b32.cont [7/16] 0.0, 128
        %900 = vxpose.xlu0.b32.cont [8/16] 0.0, 128
        %901 = vxpose.xlu0.b32.cont [9/16] 0.0, 128
        %902 = vxpose.xlu0.b32.cont [10/16] 0.0, 128
        %903 = vxpose.xlu0.b32.cont [11/16] 0.0, 128
        %904 = vxpose.xlu0.b32.cont [12/16] 0.0, 128
        %905 = vxpose.xlu0.b32.cont [13/16] 0.0, 128
        %906 = vxpose.xlu0.b32.cont [14/16] 0.0, 128
        %907 = vxpose.xlu0.b32.cont [15/16] 0.0, 128
        %908 = vxpose.xlu0.b32.end [16/16] 0.0, 128
        %v909 = vpop.trf.xlu0
        %v910 = vpop.trf.xlu0
        %v911 = vpop.trf.xlu0
        %v912 = vpop.trf.xlu0
        %v913 = vpop.trf.xlu0
        %v914 = vpop.trf.xlu0
        %v915 = vpop.trf.xlu0
        %v916 = vpop.trf.xlu0
        %v917 = vpop.trf.xlu0
        %v918 = vpop.trf.xlu0
        %v919 = vpop.trf.xlu0
        %v920 = vpop.trf.xlu0
        %v921 = vpop.trf.xlu0
        %v922 = vpop.trf.xlu0
        %v923 = vpop.trf.xlu0
        %v924 = vpop.trf.xlu0
        %v926 = vsel %vm733, %v909, 0
        %928 = vmatprep.subr.mxu0 0.0
        %929 = vmatpush1.msra.mxu0 0.0
        %930 = vmatprep.subr.mxu0 0.0
        %931 = vmatpush1.msra.mxu0 0.0
        %932 = vmatprep.subr.mxu0 0.0
        %933 = vmatpush1.msra.mxu0 0.0
        %934 = vmatprep.subr.mxu0 0.0
        %935 = vmatpush1.msra.mxu0 0.0
        %936 = vmatprep.subr.mxu0 0.0
        %937 = vmatpush1.msra.mxu0 0.0
        %938 = vmatprep.subr.mxu0 0.0
        %939 = vmatpush1.msra.mxu0 0.0
        %940 = vmatprep.subr.mxu0 0.0
        %941 = vmatpush1.msra.mxu0 0.0
        %942 = vmatprep.subr.mxu0 0.0
        %943 = vmatpush1.msra.mxu0 0.0
        %944 = vmatprep.subr.mxu0 0.0
        %945 = vmatpush1.msra.mxu0 0.0
        %946 = vmatprep.subr.mxu0 0.0
        %947 = vmatpush1.msra.mxu0 0.0
        %948 = vmatprep.subr.mxu0 0.0
        %949 = vmatpush1.msra.mxu0 0.0
        %950 = vmatprep.subr.mxu0 0.0
        %951 = vmatpush1.msra.mxu0 0.0
        %952 = vmatprep.subr.mxu0 0.0
        %953 = vmatpush1.msra.mxu0 0.0
        %954 = vmatprep.subr.mxu0 0.0
        %955 = vmatpush1.msra.mxu0 0.0
        %956 = vmatprep.subr.mxu0 0.0
        %957 = vmatpush1.msra.mxu0 0.0
        %958 = vmatprep.subr.mxu0 0.0
        %959 = vmatpush1.msra.mxu0 %v884
        %960 = vmatprep.subr.mxu0 0.0
        %961 = vmatpush2.msra.mxu0 0.0
        %962 = vmatprep.subr.mxu0 0.0
        %963 = vmatpush2.msra.mxu0 0.0
        %964 = vmatprep.subr.mxu0 0.0
        %965 = vmatpush2.msra.mxu0 0.0
        %966 = vmatprep.subr.mxu0 0.0
        %967 = vmatpush2.msra.mxu0 0.0
        %968 = vmatprep.subr.mxu0 0.0
        %969 = vmatpush2.msra.mxu0 0.0
        %970 = vmatprep.subr.mxu0 0.0
        %971 = vmatpush2.msra.mxu0 0.0
        %972 = vmatprep.subr.mxu0 0.0
        %973 = vmatpush2.msra.mxu0 0.0
        %974 = vmatprep.subr.mxu0 0.0
        %975 = vmatpush2.msra.mxu0 0.0
        %976 = vmatprep.subr.mxu0 0.0
        %977 = vmatpush2.msra.mxu0 0.0
        %978 = vmatprep.subr.mxu0 0.0
        %979 = vmatpush2.msra.mxu0 0.0
        %980 = vmatprep.subr.mxu0 0.0
        %981 = vmatpush2.msra.mxu0 0.0
        %982 = vmatprep.subr.mxu0 0.0
        %983 = vmatpush2.msra.mxu0 0.0
        %984 = vmatprep.subr.mxu0 0.0
        %985 = vmatpush2.msra.mxu0 0.0
        %986 = vmatprep.subr.mxu0 0.0
        %987 = vmatpush2.msra.mxu0 0.0
        %988 = vmatprep.subr.mxu0 0.0
        %989 = vmatpush2.msra.mxu0 0.0
        %990 = vmatprep.subr.mxu0 0.0
        %991 = vmatpush2.msra.mxu0 0.0
        %992 = vmatprep.mubr.f32.mxu0 0.0
        %993 = vmatmul.mubr.f32.gmra.mxu0 %v926
        %v994 = vpop.f32.mrf.mxu0
        %v995 = vadd.f32 0.0, %v994
        %v996 = vpop.f32.mrf.mxu0
        %997 = vdwg.mxu0
        %v998 = vadd.f32 %v892, %v995
        %999 = vst.msk [vmem:[#allocation2] sm:$0xff] %vm644, %v998
        %p1000 = scmp.eq.s32.totalorder %s29, 1
        // Predicated region
        $region93: #{tpu_custom_call.1} parent=67 // pred_check
          %p1001 = pneg %p1000
        $region94: #{tpu_custom_call.1} parent=67 // pred_check_branch
          %1003 = sbr.rel (%p1001) target = $region96
        $region95: #{tpu_custom_call.1} parent=67 // pred_region
          %v1004 = vld [vmem:[#allocation2] sm:$0xff]
          %v1005 = vld [vmem:[#allocation11] sm:$0xff]
          %v1006 = vld [vmem:[#allocation11 + $0x8] sm:$0xff]
          %v1007 = vld [vmem:[#allocation11 + $0x10] sm:$0xff]
          %v1008 = vld [vmem:[#allocation11 + $0x18] sm:$0xff]
          %v1009 = vld [vmem:[%s11] sm:$0x1]
          %v1011 = vlaneseq
          %v1012 = vshrl.u32 %v1011, 7
          %v1013 = vsub.s32 0, %v1012
          %v1014 = vrot.slane %v1009, %v1013
          %v1017 = vsel %vm644, %v1004, 0
          %1019 = vmatprep.subr.mxu0 0.0
          %1020 = vmatpush1.msra.mxu0 0.0
          %1021 = vmatprep.subr.mxu0 0.0
          %1022 = vmatpush1.msra.mxu0 0.0
          %1023 = vmatprep.subr.mxu0 0.0
          %1024 = vmatpush1.msra.mxu0 0.0
          %1025 = vmatprep.subr.mxu0 0.0
          %1026 = vmatpush1.msra.mxu0 0.0
          %1027 = vmatprep.subr.mxu0 0.0
          %1028 = vmatpush1.msra.mxu0 0.0
          %1029 = vmatprep.subr.mxu0 0.0
          %1030 = vmatpush1.msra.mxu0 0.0
          %1031 = vmatprep.subr.mxu0 0.0
          %1032 = vmatpush1.msra.mxu0 0.0
          %1033 = vmatprep.subr.mxu0 0.0
          %1034 = vmatpush1.msra.mxu0 0.0
          %1035 = vmatprep.subr.mxu0 0.0
          %1036 = vmatpush1.msra.mxu0 0.0
          %1037 = vmatprep.subr.mxu0 0.0
          %1038 = vmatpush1.msra.mxu0 0.0
          %1039 = vmatprep.subr.mxu0 0.0
          %1040 = vmatpush1.msra.mxu0 0.0
          %1041 = vmatprep.subr.mxu0 0.0
          %1042 = vmatpush1.msra.mxu0 0.0
          %1043 = vmatprep.subr.mxu0 0.0
          %1044 = vmatpush1.msra.mxu0 %v1008
          %1045 = vmatprep.subr.mxu0 0.0
          %1046 = vmatpush1.msra.mxu0 %v1007
          %1047 = vmatprep.subr.mxu0 0.0
          %1048 = vmatpush1.msra.mxu0 %v1006
          %1049 = vmatprep.subr.mxu0 0.0
          %1050 = vmatpush1.msra.mxu0 %v1005
          %1051 = vmatprep.subr.mxu0 0.0
          %1052 = vmatpush2.msra.mxu0 0.0
          %1053 = vmatprep.subr.mxu0 0.0
          %1054 = vmatpush2.msra.mxu0 0.0
          %1055 = vmatprep.subr.mxu0 0.0
          %1056 = vmatpush2.msra.mxu0 0.0
          %1057 = vmatprep.subr.mxu0 0.0
          %1058 = vmatpush2.msra.mxu0 0.0
          %1059 = vmatprep.subr.mxu0 0.0
          %1060 = vmatpush2.msra.mxu0 0.0
          %1061 = vmatprep.subr.mxu0 0.0
          %1062 = vmatpush2.msra.mxu0 0.0
          %1063 = vmatprep.subr.mxu0 0.0
          %1064 = vmatpush2.msra.mxu0 0.0
          %1065 = vmatprep.subr.mxu0 0.0
          %1066 = vmatpush2.msra.mxu0 0.0
          %1067 = vmatprep.subr.mxu0 0.0
          %1068 = vmatpush2.msra.mxu0 0.0
          %1069 = vmatprep.subr.mxu0 0.0
          %1070 = vmatpush2.msra.mxu0 0.0
          %1071 = vmatprep.subr.mxu0 0.0
          %1072 = vmatpush2.msra.mxu0 0.0
          %1073 = vmatprep.subr.mxu0 0.0
          %1074 = vmatpush2.msra.mxu0 0.0
          %1075 = vmatprep.subr.mxu0 0.0
          %1076 = vmatpush2.msra.mxu0 0.0
          %1077 = vmatprep.subr.mxu0 0.0
          %1078 = vmatpush2.msra.mxu0 0.0
          %1079 = vmatprep.subr.mxu0 0.0
          %1080 = vmatpush2.msra.mxu0 0.0
          %1081 = vmatprep.subr.mxu0 0.0
          %1082 = vmatpush2.msra.mxu0 0.0
          %1083 = vmatprep.mubr.f32.mxu0 0.0
          %1084 = vmatmul.mubr.f32.gmra.mxu0 %v1017
          %v1085 = vpop.f32.mrf.mxu0
          %v1086 = vadd.f32 %v1014, %v1085
          %v1087 = vpop.f32.mrf.mxu0
          %1088 = vdwg.mxu0
          %v1089 = vmax.f32 %v1086, 0.0
          %vm1090 = vcmp.ne.f32.partialorder %v1086, %v1086
          %v1091 = vadd.f32 %v1086, 0.0
          %v1092 = vand.u32 2147483647, %v1086
          %v1093 = vsub.f32 0.0, %v1092
          %v1094 = vmul.f32 %v1093, 1.442695
          %v1095 = vpow.pop %v1094
          %v1096 = vadd.f32 %v1095, 1.0
          %v1097 = vlog2.pop %v1096
          %v1098 = vmul.f32 %v1097, 0.6931472
          %v1099 = vmul.f32 -0.5, %v1095
          %v1100 = vadd.f32 %v1099, 1.0
          %v1101 = vmul.f32 %v1100, %v1095
          %v1102 = vand.u32 2147483647, %v1095
          %vm1103 = vcmp.lt.f32.partialorder %v1102, 0.0004427343
          %v1104 = vsel %vm1103, %v1101, %v1098
          %v1105 = vadd.f32 %v1089, %v1104
          %v1106 = vsel %vm1090, %v1091, %v1105
          %v1107 = vsub.f32 %v1106, 0.6931472
          %v1108 = vadd.f32 %v530, %v1107
          %1109 = vst.msk [vmem:[#allocation12] sm:$0xff] %vm644, %v1108
        $region96: #{tpu_custom_call.1} parent=67 // pred_fallthru
          _
        // Predicated region
        $region97: #{tpu_custom_call.1} parent=67 // pred_check
          %p1110 = pneg %p314
        $region98: #{tpu_custom_call.1} parent=67 // pred_check_branch
          %1112 = sbr.rel (%p1110) target = $region100
        $region99: #{tpu_custom_call.1} parent=67 // pred_region
          %s1114 = ssub.s32 128, 128
          %1115 = vsyncadd [#allocation5], %s1114
          %s1117 = sshll.u32 [#allocation12], 4
          %s1118 = int_to_ptr.vmem [resolvable:$true] %s1117
          %1120 = dma.vmem_to_hbm [thread:$0]  %s1118, 128, %s12, [#allocation5]
        $region100: #{tpu_custom_call.1} parent=67 // pred_fallthru
          _
        // Predicated region
        $region101: #{tpu_custom_call.1} parent=67 // pred_check
          %p1121 = pneg %p314
        $region102: #{tpu_custom_call.1} parent=67 // pred_check_branch
          %1123 = sbr.rel (%p1121) target = $region104
        $region103: #{tpu_custom_call.1} parent=67 // pred_region
          %1124 = dma.done [#allocation5], 128
        $region104: #{tpu_custom_call.1} parent=67 // pred_fallthru
          _
      $region68: #{tpu_custom_call.1} parent=5 // pred_fallthru
        _
      %p1125 = scmp.le.s32.totalorder 2, %s24
      // Predicated region
      $region105: #{tpu_custom_call.1} parent=5 // pred_check
        %p1126 = pneg %p1125
      $region106: #{tpu_custom_call.1} parent=5 // pred_check_branch
        %1128 = sbr.rel (%p1126) target = $region108
      $region107: #{tpu_custom_call.1} parent=5 // pred_region
        %s1129 = ssub.s32 %s24, 2
      $region108: #{tpu_custom_call.1} parent=5 // pred_fallthru
        _
    $region6: #{tpu_custom_call.1} parent=1 // loop_footer
      %s28 = sadd.s32 1, %s24
    $region7: #{tpu_custom_call.1} parent=1 // loop_footer_branch
      %23 = sbr.rel target = $region3
    $region8: #{tpu_custom_call.1} parent=1 // loop_exit
      _
    %1130 = vsyncpa [#allocation4], 1
    %s1131 = scalar_lea.sflag [#allocation4], 1
    %1132 = vsyncpa %s1131, 1
    %1133 = vsyncpa [#allocation7], 1
    %1134 = vsyncpa [#allocation10], 1
    %1135 = vsyncpa [#allocation5], 1
    %s1136 = scalar_lea.sflag [#allocation5], 1
    %1137 = vsyncpa %s1136, 1

</llo_original>
